<compile_context>
chip_gen: v6e
topology: v6e:2x2x1
jax: 0.10.0
libtpu: 0.0.40
codegen_flags: <defaults>
</compile_context>

<pallas_src>
import jax
import jax.numpy as jnp
import numpy as np
from jax.experimental import pallas as pl
from jax.experimental.pallas import tpu as pltpu


def encoder_block_kernel(xr_ref, w1b_ref, w2b_ref, pre_ref, pro_ref, pce_ref, pco_ref,
                         fm_ref, pool_ref, a1_ref, h1p_ref, a2_ref):
    """Single invocation (grid=(1,)), whole batch at once.

    xr_ref : (B, H+2, W*Cin)     H-padded input, (W, Cin) folded onto lanes
    w1b_ref: (3*KB1, W*Cout)     banded conv1 weights (tap index folded into K)
    w2b_ref: (3*KB2, W*Cout)     banded conv2 weights
    pre/pro: (B*Ho, B*H)         0/1 row selectors (even / odd pooled rows)
    pce/pco: (W*Cout, Wo*Cout)   0/1 lane selectors (even / odd pooled columns)
    fm_ref : (B*H, W*Cout)       feature map, lane-dense (128 lanes here)
    pool_ref:(B*Ho, Wo*Cout)     maxpooled output
    a1_ref : (B, H, 3*KB1)       VMEM scratch: im2col rows for conv1
    h1p_ref: (B, H+2, W*Cout)    VMEM scratch: row-zero-padded conv1 activation
    a2_ref : (B, H, 3*KB2)       VMEM scratch: im2col rows for conv2
    """
    B, Hp2, WCi = xr_ref.shape
    H = Hp2 - 2
    BH, WCo = fm_ref.shape
    KB1 = a1_ref.shape[-1] // 3          # 128-aligned lane stride per dy block
    KB2 = a2_ref.shape[-1] // 3

    # ---- conv1: assemble im2col rows (3 row-shifted blocks, 128-aligned lane starts),
    #      then ONE MXU matmul + ReLU.  Scratch zeroed once per call (single grid step).
    a1_ref[...] = jnp.zeros(a1_ref.shape, a1_ref.dtype)
    for dy in range(3):
        a1_ref[:, :, dy * KB1: dy * KB1 + WCi] = xr_ref[:, dy:dy + H, :]
    h1 = jnp.maximum(
        jnp.dot(a1_ref[...].reshape(BH, 3 * KB1), w1b_ref[...],
                preferred_element_type=jnp.float32), 0.0)              # (B*H, W*Cout)

    # ---- stage conv1 activation with a 1-row zero border (column border is folded
    #      into the banded weights), written once, lane-dense.
    h1p_ref[...] = jnp.zeros(h1p_ref.shape, h1p_ref.dtype)
    for b in range(B):
        h1p_ref[b, 1:H + 1, :] = h1[b * H:(b + 1) * H, :]

    # ---- conv2: same assembly + ONE matmul + ReLU.
    if WCo != KB2:  # only needed if the W*Cout block does not fill the 128-lane stride
        a2_ref[...] = jnp.zeros(a2_ref.shape, a2_ref.dtype)
    for dy in range(3):
        a2_ref[:, :, dy * KB2: dy * KB2 + WCo] = h1p_ref[:, dy:dy + H, :]
    h2 = jnp.maximum(
        jnp.dot(a2_ref[...].reshape(BH, 3 * KB2), w2b_ref[...],
                preferred_element_type=jnp.float32), 0.0)              # (B*H, W*Cout)

    fm_ref[...] = h2.astype(fm_ref.dtype)                              # 128-lane dense store

    # ---- MaxPool2d(2, 2), fully in-register from h2:
    #      0/1 selector matmuls are exact row / lane gathers executed on the MXU
    #      (which has huge slack), so no fm_ref read-back and no strided VMEM access.
    r_even = jnp.dot(pre_ref[...], h2, preferred_element_type=jnp.float32)
    r_odd = jnp.dot(pro_ref[...], h2, preferred_element_type=jnp.float32)
    v = jnp.maximum(r_even, r_odd)                                     # vertical 2-max
    c_even = jnp.dot(v, pce_ref[...], preferred_element_type=jnp.float32)
    c_odd = jnp.dot(v, pco_ref[...], preferred_element_type=jnp.float32)
    pool_ref[...] = jnp.maximum(c_even, c_odd).astype(pool_ref.dtype)  # horizontal 2-max


def _banded_conv_weight(w_hwio, W, kb):
    """(3, 3, Ci, Co) -> (3*kb, W*Co) banded matrix for the folded im2col matmul.

    Row index  = dy*kb + wu*Ci + ci   (wu = unpadded input column, rows >= W*Ci are zero)
    Col index  = x*Co + co            (x  = output column)
    Entry      = w[dy, wu - x + 1, ci, co] when 0 <= wu - x + 1 < 3, else 0
    (out-of-band taps correspond to the SAME-padding zero columns).
    """
    kh, kw, Ci, Co = w_hwio.shape
    sel = np.zeros((kb, kw, Ci, W), np.float32)
    for dx in range(kw):
        for ci in range(Ci):
            for x in range(W):
                wu = x + dx - 1
                if 0 <= wu < W:
                    sel[wu * Ci + ci, dx, ci, x] = 1.0
    wb = jnp.einsum("jdcx,ydco->yjxo", jnp.asarray(sel), w_hwio)       # (3, kb, W, Co)
    return wb.reshape(kh * kb, W * Co)


def _pool_selectors(B, H, W, Co):
    """Exact 0/1 gather matrices for the 2x2/stride-2 max pool in folded layout."""
    Ho, Wo = H // 2, W // 2
    pre = np.zeros((B * Ho, B * H), np.float32)
    pro = np.zeros((B * Ho, B * H), np.float32)
    for b in range(B):
        for yo in range(Ho):
            pre[b * Ho + yo, b * H + 2 * yo] = 1.0
            pro[b * Ho + yo, b * H + 2 * yo + 1] = 1.0
    pce = np.zeros((W * Co, Wo * Co), np.float32)
    pco = np.zeros((W * Co, Wo * Co), np.float32)
    for xo in range(Wo):
        for c in range(Co):
            pce[(2 * xo) * Co + c, xo * Co + c] = 1.0
            pco[(2 * xo + 1) * Co + c, xo * Co + c] = 1.0
    return (jnp.asarray(pre), jnp.asarray(pro), jnp.asarray(pce), jnp.asarray(pco))


def encoder_block_forward(x_nchw, w1_hwio, w2_hwio):
    """EncoderBlock.forward. x_nchw: (B, Cin, H, W). Returns (feature_map, pooled) in NCHW."""
    B, Cin, H, W = x_nchw.shape
    Cout = w1_hwio.shape[-1]
    Ho, Wo = H // 2, W // 2
    KB1 = -(-(W * Cin) // 128) * 128     # 128-aligned lane stride for conv1 dy-blocks
    KB2 = -(-(W * Cout) // 128) * 128    # idem for conv2

    # ---- wrapper-side layout plumbing: NCHW -> NHWC, pad rows only, fold (W, C) on lanes
    x = jnp.transpose(x_nchw, (0, 2, 3, 1))
    xr = jnp.pad(x, ((0, 0), (1, 1), (0, 0), (0, 0))).reshape(B, H + 2, W * Cin)
    w1b = _banded_conv_weight(w1_hwio, W, KB1)           # (3*KB1, W*Cout)
    w2b = _banded_conv_weight(w2_hwio, W, KB2)           # (3*KB2, W*Cout)
    pre, pro, pce, pco = _pool_selectors(B, H, W, Cout)

    fm_f, pool_f = pl.pallas_call(
        encoder_block_kernel,
        grid=(1,),  # batch folded into the matmul M dim: a single kernel invocation
        in_specs=[
            pl.BlockSpec((B, H + 2, W * Cin), lambda i: (0, 0, 0)),
            pl.BlockSpec((3 * KB1, W * Cout), lambda i: (0, 0)),
            pl.BlockSpec((3 * KB2, W * Cout), lambda i: (0, 0)),
            pl.BlockSpec((B * Ho, B * H), lambda i: (0, 0)),
            pl.BlockSpec((B * Ho, B * H), lambda i: (0, 0)),
            pl.BlockSpec((W * Cout, Wo * Cout), lambda i: (0, 0)),
            pl.BlockSpec((W * Cout, Wo * Cout), lambda i: (0, 0)),
        ],
        out_specs=(
            pl.BlockSpec((B * H, W * Cout), lambda i: (0, 0)),
            pl.BlockSpec((B * Ho, Wo * Cout), lambda i: (0, 0)),
        ),
        out_shape=(
            jax.ShapeDtypeStruct((B * H, W * Cout), jnp.float32),
            jax.ShapeDtypeStruct((B * Ho, Wo * Cout), jnp.float32),
        ),
        scratch_shapes=[
            pltpu.VMEM((B, H, 3 * KB1), jnp.float32),          # conv1 im2col rows
            pltpu.VMEM((B, H + 2, W * Cout), jnp.float32),     # row-padded conv1 activation
            pltpu.VMEM((B, H, 3 * KB2), jnp.float32),          # conv2 im2col rows
        ],
        # Single step -> nothing to shard; when scaled to real UNet sizes, tile H into
        # row strips and mark that axis "parallel" for v7x's two TensorCores.
        compiler_params=pltpu.CompilerParams(dimension_semantics=("arbitrary",)),
    )(xr, w1b, w2b, pre, pro, pce, pco)

    # Back to NCHW exactly like the PyTorch module.
    fm = jnp.transpose(fm_f.reshape(B, H, W, Cout), (0, 3, 1, 2))
    pooled = jnp.transpose(pool_f.reshape(B, Ho, Wo, Cout), (0, 3, 1, 2))
    return fm, pooled


def ref_forward(x_nchw, w1_hwio, w2_hwio):
    """Pure-JAX reference (same math as the PyTorch module)."""
    x = jnp.transpose(x_nchw, (0, 2, 3, 1))
    dn1 = jax.lax.conv_dimension_numbers(x.shape, w1_hwio.shape, ("NHWC", "HWIO", "NHWC"))
    h1 = jnp.maximum(jax.lax.conv_general_dilated(
        x, w1_hwio, (1, 1), "SAME", dimension_numbers=dn1), 0.0)
    dn2 = jax.lax.conv_dimension_numbers(h1.shape, w2_hwio.shape, ("NHWC", "HWIO", "NHWC"))
    h2 = jnp.maximum(jax.lax.conv_general_dilated(
        h1, w2_hwio, (1, 1), "SAME", dimension_numbers=dn2), 0.0)
    pooled = jax.lax.reduce_window(h2, -jnp.inf, jax.lax.max,
                                   (1, 2, 2, 1), (1, 2, 2, 1), "VALID")
    return jnp.transpose(h2, (0, 3, 1, 2)), jnp.transpose(pooled, (0, 3, 1, 2))


if __name__ == "__main__":
    B, Cin, Cout, H, W = 2, 4, 8, 16, 16
    key = jax.random.PRNGKey(0)
    kx, kw1, kw2 = jax.random.split(key, 3)
    x = jax.random.normal(kx, (B, Cin, H, W), jnp.float32)
    # Deterministic synthetic weights, HWIO layout (3, 3, Cin, Cout), bias-free convs.
    w1 = 0.2 * jax.random.normal(kw1, (3, 3, Cin, Cout), jnp.float32)
    w2 = 0.2 * jax.random.normal(kw2, (3, 3, Cout, Cout), jnp.float32)

    fm, pooled = encoder_block_forward(x, w1, w2)
    jax.block_until_ready((fm, pooled))

    fm_ref, pooled_ref = ref_forward(x, w1, w2)
    assert fm.shape == (B, Cout, H, W)
    assert pooled.shape == (B, Cout, H // 2, W // 2)
    assert jnp.allclose(fm, fm_ref, atol=2e-4, rtol=2e-4)
    assert jnp.allclose(pooled, pooled_ref, atol=2e-4, rtol=2e-4)
    print("KERNEL_OK")
</pallas_src>

<mosaic_0001>
module attributes {stable_mosaic.version = 11 : i64} {
  func.func @encoder_block_kernel(%arg0: i32, %arg1: memref<2x18x64xf32, #tpu.memory_space<vmem>>, %arg2: memref<384x128xf32, #tpu.memory_space<vmem>>, %arg3: memref<384x128xf32, #tpu.memory_space<vmem>>, %arg4: memref<16x32xf32, #tpu.memory_space<vmem>>, %arg5: memref<16x32xf32, #tpu.memory_space<vmem>>, %arg6: memref<128x64xf32, #tpu.memory_space<vmem>>, %arg7: memref<128x64xf32, #tpu.memory_space<vmem>>, %arg8: memref<32x128xf32, #tpu.memory_space<vmem>>, %arg9: memref<16x64xf32, #tpu.memory_space<vmem>>, %arg10: memref<2x16x384xf32, #tpu.memory_space<vmem>>, %arg11: memref<2x18x128xf32, #tpu.memory_space<vmem>>, %arg12: memref<2x16x384xf32, #tpu.memory_space<vmem>>) attributes {dimension_semantics = [#tpu.dimension_semantics<arbitrary>], iteration_bounds = array<i64: 1>, scalar_prefetch = 0 : i64, scratch_operands = 3 : i64, tpu.core_type = #tpu.core_type<tc>, window_params = [{pipeline_mode = #tpu.pipeline_mode<synchronous>, transform_indices = @transform_0, window_bounds = array<i64: 2, 18, 64>}, {pipeline_mode = #tpu.pipeline_mode<synchronous>, transform_indices = @transform_1, window_bounds = array<i64: 384, 128>}, {pipeline_mode = #tpu.pipeline_mode<synchronous>, transform_indices = @transform_2, window_bounds = array<i64: 384, 128>}, {pipeline_mode = #tpu.pipeline_mode<synchronous>, transform_indices = @transform_3, window_bounds = array<i64: 16, 32>}, {pipeline_mode = #tpu.pipeline_mode<synchronous>, transform_indices = @transform_4, window_bounds = array<i64: 16, 32>}, {pipeline_mode = #tpu.pipeline_mode<synchronous>, transform_indices = @transform_5, window_bounds = array<i64: 128, 64>}, {pipeline_mode = #tpu.pipeline_mode<synchronous>, transform_indices = @transform_6, window_bounds = array<i64: 128, 64>}, {pipeline_mode = #tpu.pipeline_mode<synchronous>, transform_indices = @transform_7, window_bounds = array<i64: 32, 128>}, {pipeline_mode = #tpu.pipeline_mode<synchronous>, transform_indices = @transform_8, window_bounds = array<i64: 16, 64>}]} {
    %cst = arith.constant 0.000000e+00 : f32
    %0 = vector.broadcast %cst : f32 to vector<2x16x384xf32>
    %c0 = arith.constant 0 : index
    %c0_0 = arith.constant 0 : index
    %c0_1 = arith.constant 0 : index
    %1 = vector.load %arg10[%c0, %c0_0, %c0_1] : memref<2x16x384xf32, #tpu.memory_space<vmem>>, vector<2x16x384xf32>
    tpu.vector_store %arg10[%c0, %c0_0, %c0_1], %0 {strides = array<i32>} : memref<2x16x384xf32, #tpu.memory_space<vmem>>, vector<2x16x384xf32>,
    %c0_2 = arith.constant 0 : index
    %c0_3 = arith.constant 0 : index
    %c0_4 = arith.constant 0 : index
    %2 = vector.load %arg1[%c0_2, %c0_3, %c0_4] : memref<2x18x64xf32, #tpu.memory_space<vmem>>, vector<2x16x64xf32>
    %c0_5 = arith.constant 0 : index
    %c0_6 = arith.constant 0 : index
    %c0_7 = arith.constant 0 : index
    %3 = vector.load %arg10[%c0_5, %c0_6, %c0_7] : memref<2x16x384xf32, #tpu.memory_space<vmem>>, vector<2x16x64xf32>
    tpu.vector_store %arg10[%c0_5, %c0_6, %c0_7], %2 {strides = array<i32>} : memref<2x16x384xf32, #tpu.memory_space<vmem>>, vector<2x16x64xf32>,
    %c0_8 = arith.constant 0 : index
    %c1 = arith.constant 1 : index
    %c0_9 = arith.constant 0 : index
    %4 = vector.load %arg1[%c0_8, %c1, %c0_9] : memref<2x18x64xf32, #tpu.memory_space<vmem>>, vector<2x16x64xf32>
    %c0_10 = arith.constant 0 : index
    %c0_11 = arith.constant 0 : index
    %c128 = arith.constant 128 : index
    %5 = vector.load %arg10[%c0_10, %c0_11, %c128] : memref<2x16x384xf32, #tpu.memory_space<vmem>>, vector<2x16x64xf32>
    tpu.vector_store %arg10[%c0_10, %c0_11, %c128], %4 {strides = array<i32>} : memref<2x16x384xf32, #tpu.memory_space<vmem>>, vector<2x16x64xf32>,
    %c0_12 = arith.constant 0 : index
    %c2 = arith.constant 2 : index
    %c0_13 = arith.constant 0 : index
    %6 = vector.load %arg1[%c0_12, %c2, %c0_13] : memref<2x18x64xf32, #tpu.memory_space<vmem>>, vector<2x16x64xf32>
    %c0_14 = arith.constant 0 : index
    %c0_15 = arith.constant 0 : index
    %c256 = arith.constant 256 : index
    %7 = vector.load %arg10[%c0_14, %c0_15, %c256] : memref<2x16x384xf32, #tpu.memory_space<vmem>>, vector<2x16x64xf32>
    tpu.vector_store %arg10[%c0_14, %c0_15, %c256], %6 {strides = array<i32>} : memref<2x16x384xf32, #tpu.memory_space<vmem>>, vector<2x16x64xf32>,
    %c0_16 = arith.constant 0 : index
    %c0_17 = arith.constant 0 : index
    %c0_18 = arith.constant 0 : index
    %8 = vector.load %arg10[%c0_16, %c0_17, %c0_18] : memref<2x16x384xf32, #tpu.memory_space<vmem>>, vector<2x16x384xf32>
    %9 = vector.shape_cast %8 : vector<2x16x384xf32> to vector<32x384xf32>
    %c0_19 = arith.constant 0 : index
    %c0_20 = arith.constant 0 : index
    %10 = vector.load %arg2[%c0_19, %c0_20] : memref<384x128xf32, #tpu.memory_space<vmem>>, vector<384x128xf32>
    %cst_21 = arith.constant dense<0.000000e+00> : vector<32x128xf32>
    %11 = tpu.matmul %9, %10, %cst_21 {dimension_numbers = #tpu.dot_dimension_numbers<[1], [0], [0], [1], [0, 0, 1, 1], [], []>} : vector<32x384xf32>, vector<384x128xf32>, vector<32x128xf32> -> vector<32x128xf32>
    %cst_22 = arith.constant 0.000000e+00 : f32
    %12 = vector.broadcast %cst_22 : f32 to vector<32x128xf32>
    %13 = arith.maximumf %11, %12 : vector<32x128xf32>
    %cst_23 = arith.constant 0.000000e+00 : f32
    %14 = vector.broadcast %cst_23 : f32 to vector<2x18x128xf32>
    %c0_24 = arith.constant 0 : index
    %c0_25 = arith.constant 0 : index
    %c0_26 = arith.constant 0 : index
    %15 = vector.load %arg11[%c0_24, %c0_25, %c0_26] : memref<2x18x128xf32, #tpu.memory_space<vmem>>, vector<2x18x128xf32>
    tpu.vector_store %arg11[%c0_24, %c0_25, %c0_26], %14 {strides = array<i32>} : memref<2x18x128xf32, #tpu.memory_space<vmem>>, vector<2x18x128xf32>,
    %16 = vector.extract_strided_slice %13 {offsets = [0, 0], sizes = [16, 128], strides = [1, 1]} : vector<32x128xf32> to vector<16x128xf32>
    %c0_27 = arith.constant 0 : index
    %c1_28 = arith.constant 1 : index
    %c0_29 = arith.constant 0 : index
    %17 = vector.load %arg11[%c0_27, %c1_28, %c0_29] : memref<2x18x128xf32, #tpu.memory_space<vmem>>, vector<1x16x128xf32>
    %18 = vector.shape_cast %17 : vector<1x16x128xf32> to vector<16x128xf32>
    %19 = vector.shape_cast %16 : vector<16x128xf32> to vector<1x16x128xf32>
    tpu.vector_store %arg11[%c0_27, %c1_28, %c0_29], %19 {strides = array<i32>} : memref<2x18x128xf32, #tpu.memory_space<vmem>>, vector<1x16x128xf32>,
    %20 = vector.extract_strided_slice %13 {offsets = [16, 0], sizes = [16, 128], strides = [1, 1]} : vector<32x128xf32> to vector<16x128xf32>
    %c1_30 = arith.constant 1 : index
    %c1_31 = arith.constant 1 : index
    %c0_32 = arith.constant 0 : index
    %21 = vector.load %arg11[%c1_30, %c1_31, %c0_32] : memref<2x18x128xf32, #tpu.memory_space<vmem>>, vector<1x16x128xf32>
    %22 = vector.shape_cast %21 : vector<1x16x128xf32> to vector<16x128xf32>
    %23 = vector.shape_cast %20 : vector<16x128xf32> to vector<1x16x128xf32>
    tpu.vector_store %arg11[%c1_30, %c1_31, %c0_32], %23 {strides = array<i32>} : memref<2x18x128xf32, #tpu.memory_space<vmem>>, vector<1x16x128xf32>,
    %c0_33 = arith.constant 0 : index
    %c0_34 = arith.constant 0 : index
    %c0_35 = arith.constant 0 : index
    %24 = vector.load %arg11[%c0_33, %c0_34, %c0_35] : memref<2x18x128xf32, #tpu.memory_space<vmem>>, vector<2x16x128xf32>
    %c0_36 = arith.constant 0 : index
    %c0_37 = arith.constant 0 : index
    %c0_38 = arith.constant 0 : index
    %25 = vector.load %arg12[%c0_36, %c0_37, %c0_38] : memref<2x16x384xf32, #tpu.memory_space<vmem>>, vector<2x16x128xf32>
    tpu.vector_store %arg12[%c0_36, %c0_37, %c0_38], %24 {strides = array<i32>} : memref<2x16x384xf32, #tpu.memory_space<vmem>>, vector<2x16x128xf32>,
    %c0_39 = arith.constant 0 : index
    %c1_40 = arith.constant 1 : index
    %c0_41 = arith.constant 0 : index
    %26 = vector.load %arg11[%c0_39, %c1_40, %c0_41] : memref<2x18x128xf32, #tpu.memory_space<vmem>>, vector<2x16x128xf32>
    %c0_42 = arith.constant 0 : index
    %c0_43 = arith.constant 0 : index
    %c128_44 = arith.constant 128 : index
    %27 = vector.load %arg12[%c0_42, %c0_43, %c128_44] : memref<2x16x384xf32, #tpu.memory_space<vmem>>, vector<2x16x128xf32>
    tpu.vector_store %arg12[%c0_42, %c0_43, %c128_44], %26 {strides = array<i32>} : memref<2x16x384xf32, #tpu.memory_space<vmem>>, vector<2x16x128xf32>,
    %c0_45 = arith.constant 0 : index
    %c2_46 = arith.constant 2 : index
    %c0_47 = arith.constant 0 : index
    %28 = vector.load %arg11[%c0_45, %c2_46, %c0_47] : memref<2x18x128xf32, #tpu.memory_space<vmem>>, vector<2x16x128xf32>
    %c0_48 = arith.constant 0 : index
    %c0_49 = arith.constant 0 : index
    %c256_50 = arith.constant 256 : index
    %29 = vector.load %arg12[%c0_48, %c0_49, %c256_50] : memref<2x16x384xf32, #tpu.memory_space<vmem>>, vector<2x16x128xf32>
    tpu.vector_store %arg12[%c0_48, %c0_49, %c256_50], %28 {strides = array<i32>} : memref<2x16x384xf32, #tpu.memory_space<vmem>>, vector<2x16x128xf32>,
    %c0_51 = arith.constant 0 : index
    %c0_52 = arith.constant 0 : index
    %c0_53 = arith.constant 0 : index
    %30 = vector.load %arg12[%c0_51, %c0_52, %c0_53] : memref<2x16x384xf32, #tpu.memory_space<vmem>>, vector<2x16x384xf32>
    %31 = vector.shape_cast %30 : vector<2x16x384xf32> to vector<32x384xf32>
    %c0_54 = arith.constant 0 : index
    %c0_55 = arith.constant 0 : index
    %32 = vector.load %arg3[%c0_54, %c0_55] : memref<384x128xf32, #tpu.memory_space<vmem>>, vector<384x128xf32>
    %cst_56 = arith.constant dense<0.000000e+00> : vector<32x128xf32>
    %33 = tpu.matmul %31, %32, %cst_56 {dimension_numbers = #tpu.dot_dimension_numbers<[1], [0], [0], [1], [0, 0, 1, 1], [], []>} : vector<32x384xf32>, vector<384x128xf32>, vector<32x128xf32> -> vector<32x128xf32>
    %cst_57 = arith.constant 0.000000e+00 : f32
    %34 = vector.broadcast %cst_57 : f32 to vector<32x128xf32>
    %35 = arith.maximumf %33, %34 : vector<32x128xf32>
    %c0_58 = arith.constant 0 : index
    %c0_59 = arith.constant 0 : index
    %36 = vector.load %arg8[%c0_58, %c0_59] : memref<32x128xf32, #tpu.memory_space<vmem>>, vector<32x128xf32>
    tpu.vector_store %arg8[%c0_58, %c0_59], %35 {strides = array<i32>} : memref<32x128xf32, #tpu.memory_space<vmem>>, vector<32x128xf32>,
    %c0_60 = arith.constant 0 : index
    %c0_61 = arith.constant 0 : index
    %37 = vector.load %arg4[%c0_60, %c0_61] : memref<16x32xf32, #tpu.memory_space<vmem>>, vector<16x32xf32>
    %cst_62 = arith.constant dense<0.000000e+00> : vector<16x128xf32>
    %38 = tpu.matmul %37, %35, %cst_62 {dimension_numbers = #tpu.dot_dimension_numbers<[1], [0], [0], [1], [0, 0, 1, 1], [], []>} : vector<16x32xf32>, vector<32x128xf32>, vector<16x128xf32> -> vector<16x128xf32>
    %c0_63 = arith.constant 0 : index
    %c0_64 = arith.constant 0 : index
    %39 = vector.load %arg5[%c0_63, %c0_64] : memref<16x32xf32, #tpu.memory_space<vmem>>, vector<16x32xf32>
    %cst_65 = arith.constant dense<0.000000e+00> : vector<16x128xf32>
    %40 = tpu.matmul %39, %35, %cst_65 {dimension_numbers = #tpu.dot_dimension_numbers<[1], [0], [0], [1], [0, 0, 1, 1], [], []>} : vector<16x32xf32>, vector<32x128xf32>, vector<16x128xf32> -> vector<16x128xf32>
    %41 = arith.maximumf %38, %40 : vector<16x128xf32>
    %c0_66 = arith.constant 0 : index
    %c0_67 = arith.constant 0 : index
    %42 = vector.load %arg6[%c0_66, %c0_67] : memref<128x64xf32, #tpu.memory_space<vmem>>, vector<128x64xf32>
    %cst_68 = arith.constant dense<0.000000e+00> : vector<16x64xf32>
    %43 = tpu.matmul %41, %42, %cst_68 {dimension_numbers = #tpu.dot_dimension_numbers<[1], [0], [0], [1], [0, 0, 1, 1], [], []>} : vector<16x128xf32>, vector<128x64xf32>, vector<16x64xf32> -> vector<16x64xf32>
    %c0_69 = arith.constant 0 : index
    %c0_70 = arith.constant 0 : index
    %44 = vector.load %arg7[%c0_69, %c0_70] : memref<128x64xf32, #tpu.memory_space<vmem>>, vector<128x64xf32>
    %cst_71 = arith.constant dense<0.000000e+00> : vector<16x64xf32>
    %45 = tpu.matmul %41, %44, %cst_71 {dimension_numbers = #tpu.dot_dimension_numbers<[1], [0], [0], [1], [0, 0, 1, 1], [], []>} : vector<16x128xf32>, vector<128x64xf32>, vector<16x64xf32> -> vector<16x64xf32>
    %46 = arith.maximumf %43, %45 : vector<16x64xf32>
    %c0_72 = arith.constant 0 : index
    %c0_73 = arith.constant 0 : index
    %47 = vector.load %arg9[%c0_72, %c0_73] : memref<16x64xf32, #tpu.memory_space<vmem>>, vector<16x64xf32>
    tpu.vector_store %arg9[%c0_72, %c0_73], %46 {strides = array<i32>} : memref<16x64xf32, #tpu.memory_space<vmem>>, vector<16x64xf32>,
    return
  }
  func.func @transform_0(%arg0: i32) -> (i32, i32, i32) {
    %c0_i32 = arith.constant 0 : i32
    %c0_i32_0 = arith.constant 0 : i32
    %c0_i32_1 = arith.constant 0 : i32
    %c0_i32_2 = arith.constant 0 : i32
    return %c0_i32, %c0_i32_0, %c0_i32_1 : i32, i32, i32
  }
  func.func @transform_1(%arg0: i32) -> (i32, i32) {
    %c0_i32 = arith.constant 0 : i32
    %c0_i32_0 = arith.constant 0 : i32
    %c0_i32_1 = arith.constant 0 : i32
    return %c0_i32, %c0_i32_0 : i32, i32
  }
  func.func @transform_2(%arg0: i32) -> (i32, i32) {
    %c0_i32 = arith.constant 0 : i32
    %c0_i32_0 = arith.constant 0 : i32
    %c0_i32_1 = arith.constant 0 : i32
    return %c0_i32, %c0_i32_0 : i32, i32
  }
  func.func @transform_3(%arg0: i32) -> (i32, i32) {
    %c0_i32 = arith.constant 0 : i32
    %c0_i32_0 = arith.constant 0 : i32
    %c0_i32_1 = arith.constant 0 : i32
    return %c0_i32, %c0_i32_0 : i32, i32
  }
  func.func @transform_4(%arg0: i32) -> (i32, i32) {
    %c0_i32 = arith.constant 0 : i32
    %c0_i32_0 = arith.constant 0 : i32
    %c0_i32_1 = arith.constant 0 : i32
    return %c0_i32, %c0_i32_0 : i32, i32
  }
  func.func @transform_5(%arg0: i32) -> (i32, i32) {
    %c0_i32 = arith.constant 0 : i32
    %c0_i32_0 = arith.constant 0 : i32
    %c0_i32_1 = arith.constant 0 : i32
    return %c0_i32, %c0_i32_0 : i32, i32
  }
  func.func @transform_6(%arg0: i32) -> (i32, i32) {
    %c0_i32 = arith.constant 0 : i32
    %c0_i32_0 = arith.constant 0 : i32
    %c0_i32_1 = arith.constant 0 : i32
    return %c0_i32, %c0_i32_0 : i32, i32
  }
  func.func @transform_7(%arg0: i32) -> (i32, i32) {
    %c0_i32 = arith.constant 0 : i32
    %c0_i32_0 = arith.constant 0 : i32
    %c0_i32_1 = arith.constant 0 : i32
    return %c0_i32, %c0_i32_0 : i32, i32
  }
  func.func @transform_8(%arg0: i32) -> (i32, i32) {
    %c0_i32 = arith.constant 0 : i32
    %c0_i32_0 = arith.constant 0 : i32
    %c0_i32_1 = arith.constant 0 : i32
    return %c0_i32, %c0_i32_0 : i32, i32
  }
}

</mosaic_0001>

<llo_original>
// kernel: tpu_custom_call.1
$region0: #{tpu_custom_call.1}
  #allocation0 [shape = 'u32[]', space=smem, size = 0x4, offset = 0x4, fixed_abs, tag = 'smem constant byte address 0x4 - core index']
  #allocation1 [shape = 'u32[144,128]{1,0:T(1,128)}', space=vmem, size = 0x12000, scoped, tag = 'internal scratch']
  #allocation2 [shape = 'f32[2,16,384]{2,1,0:T(8,128)}', space=vmem, size = 0xc000, scoped, tag = 'scratch operand']
  #allocation3 [shape = 'f32[2,18,128]{2,1,0:T(8,128)}', space=vmem, size = 0x6000, scoped, tag = 'scratch operand']
  #allocation4 [shape = 'f32[2,16,384]{2,1,0:T(8,128)}', space=vmem, size = 0xc000, scoped, tag = 'scratch operand']
  %s0 = inlined_call_operand.vmem [shape: f32[2,18,64], index: 0, kind: input, shape index: {}]
  %s1 = inlined_call_operand.vmem [shape: f32[384,128], index: 1, kind: input, shape index: {}]
  %s2 = inlined_call_operand.hbm [shape: f32[384,128], index: 2, kind: input, shape index: {}]
  %s3 = inlined_call_operand.vmem [shape: f32[16,32], index: 3, kind: input, shape index: {}]
  %s4 = inlined_call_operand.hbm [shape: f32[16,32], index: 4, kind: input, shape index: {}]
  %s5 = inlined_call_operand.vmem [shape: f32[128,64], index: 5, kind: input, shape index: {}]
  %s6 = inlined_call_operand.vmem [shape: f32[128,64], index: 6, kind: input, shape index: {}]
  %s7 = inlined_call_operand.hbm [shape: f32[32,128], index: 7, kind: output, shape index: {0}]
  %s8 = inlined_call_operand.hbm [shape: f32[16,64], index: 8, kind: output, shape index: {1}]
  %9 = xla_tuple %s7, %s8
  %s10 = sld [smem:[#allocation0]]
  $region54: #{tpu_custom_call.1} parent=0
    _
  %s12 = ssub.s32 1, %s10
  %s13 = scalar_select 0, %s12, %s10
  $region1: #{tpu_custom_call.1} parent=0
    #allocation5 [shape = 'u8[196608]{0}', space=vmem, size = 0x30000, scoped, tag = 'input window, operand 2, single buffered']
    #allocation6 [shape = 's32[1]{0}', space=sflag, size = 0x4, scoped, tag = 'scoped memory for tpu_custom_call.1']
    #allocation7 [shape = 's32[1]{0}', space=sflag, size = 0x4, scoped, tag = 'scoped memory for tpu_custom_call.1']
    #allocation8 [shape = 'u8[8192]{0}', space=vmem, size = 0x2000, scoped, tag = 'input window, operand 4, single buffered']
    #allocation9 [shape = 's32[1]{0}', space=sflag, size = 0x4, scoped, tag = 'scoped memory for tpu_custom_call.1']
    #allocation10 [shape = 'u8[16384]{0}', space=vmem, size = 0x4000, scoped, tag = 'output window, operand 0, single buffered']
    #allocation11 [shape = 'u8[8192]{0}', space=vmem, size = 0x2000, scoped, tag = 'output window, operand 1, single buffered']
    #allocation12 [shape = 's32[1]{0}', space=sflag, size = 0x4, scoped, tag = 'scoped memory for tpu_custom_call.1']
    %14 = vsyncpa [#allocation6], 0
    %15 = vsyncpa [#allocation9], 0
    %16 = vsyncpa [#allocation7], 0
    %17 = vsyncpa [#allocation12], 0
    // Predicated region
    $region2: #{tpu_custom_call.1} parent=1 // pred_check
      _
    $region3: #{tpu_custom_call.1} parent=1 // pred_check_branch
      %19 = sbr.rel (0) target = $region5
    $region4: #{tpu_custom_call.1} parent=1 // pred_region
      _
    $region5: #{tpu_custom_call.1} parent=1 // pred_fallthru
      _
    // Predicated region
    $region6: #{tpu_custom_call.1} parent=1 // pred_check
      _
    $region7: #{tpu_custom_call.1} parent=1 // pred_check_branch
      %21 = sbr.rel (0) target = $region9
    $region8: #{tpu_custom_call.1} parent=1 // pred_region
      _
    $region9: #{tpu_custom_call.1} parent=1 // pred_fallthru
      _
    // Predicated region
    $region10: #{tpu_custom_call.1} parent=1 // pred_check
      _
    $region11: #{tpu_custom_call.1} parent=1 // pred_check_branch
      %23 = sbr.rel (0) target = $region13
    $region12: #{tpu_custom_call.1} parent=1 // pred_region
      %s25 = ssub.s32 6144, 6144
      %26 = vsyncadd [#allocation6], %s25
      %s27 = sshll.u32 [#allocation5], 4
      %s28 = int_to_ptr.vmem [resolvable:$true] %s27
      %33 = dma.hbm_to_vmem [thread:$0]  %s2, 6144, %s28, [#allocation6], 128, 128, 8
    $region13: #{tpu_custom_call.1} parent=1 // pred_fallthru
      _
    // Predicated region
    $region14: #{tpu_custom_call.1} parent=1 // pred_check
      _
    $region15: #{tpu_custom_call.1} parent=1 // pred_check_branch
      %35 = sbr.rel (0) target = $region17
    $region16: #{tpu_custom_call.1} parent=1 // pred_region
      _
    $region17: #{tpu_custom_call.1} parent=1 // pred_fallthru
      _
    // Predicated region
    $region18: #{tpu_custom_call.1} parent=1 // pred_check
      _
    $region19: #{tpu_custom_call.1} parent=1 // pred_check_branch
      %37 = sbr.rel (0) target = $region21
    $region20: #{tpu_custom_call.1} parent=1 // pred_region
      %s39 = ssub.s32 256, 256
      %40 = vsyncadd [#allocation9], %s39
      %s41 = sshll.u32 [#allocation8], 4
      %s42 = int_to_ptr.vmem [resolvable:$true] %s41
      %47 = dma.hbm_to_vmem [thread:$0]  %s4, 256, %s42, [#allocation9], 128, 128, 8
    $region21: #{tpu_custom_call.1} parent=1 // pred_fallthru
      _
    // Predicated region
    $region22: #{tpu_custom_call.1} parent=1 // pred_check
      _
    $region23: #{tpu_custom_call.1} parent=1 // pred_check_branch
      %49 = sbr.rel (0) target = $region25
    $region24: #{tpu_custom_call.1} parent=1 // pred_region
      _
    $region25: #{tpu_custom_call.1} parent=1 // pred_fallthru
      _
    // Predicated region
    $region26: #{tpu_custom_call.1} parent=1 // pred_check
      _
    $region27: #{tpu_custom_call.1} parent=1 // pred_check_branch
      %51 = sbr.rel (0) target = $region29
    $region28: #{tpu_custom_call.1} parent=1 // pred_region
      _
    $region29: #{tpu_custom_call.1} parent=1 // pred_fallthru
      _
    // Predicated region
    $region30: #{tpu_custom_call.1} parent=1 // pred_check
      _
    $region31: #{tpu_custom_call.1} parent=1 // pred_check_branch
      %53 = sbr.rel (0) target = $region33
    $region32: #{tpu_custom_call.1} parent=1 // pred_region
      %54 = dma.done [#allocation6], 6144
    $region33: #{tpu_custom_call.1} parent=1 // pred_fallthru
      _
    // Predicated region
    $region34: #{tpu_custom_call.1} parent=1 // pred_check
      _
    $region35: #{tpu_custom_call.1} parent=1 // pred_check_branch
      %56 = sbr.rel (0) target = $region37
    $region36: #{tpu_custom_call.1} parent=1 // pred_region
      %57 = dma.done [#allocation9], 256
    $region37: #{tpu_custom_call.1} parent=1 // pred_fallthru
      _
    %58 = vst [vmem:[#allocation2] sm:$0xff] 0.0
    %59 = vst [vmem:[#allocation2 + $0x8] sm:$0xff] 0.0
    %60 = vst [vmem:[#allocation2 + $0x10] sm:$0xff] 0.0
    %61 = vst [vmem:[#allocation2 + $0x18] sm:$0xff] 0.0
    %62 = vst [vmem:[#allocation2 + $0x20] sm:$0xff] 0.0
    %63 = vst [vmem:[#allocation2 + $0x28] sm:$0xff] 0.0
    %64 = vst [vmem:[#allocation2 + $0x30] sm:$0xff] 0.0
    %65 = vst [vmem:[#allocation2 + $0x38] sm:$0xff] 0.0
    %66 = vst [vmem:[#allocation2 + $0x40] sm:$0xff] 0.0
    %67 = vst [vmem:[#allocation2 + $0x48] sm:$0xff] 0.0
    %68 = vst [vmem:[#allocation2 + $0x50] sm:$0xff] 0.0
    %69 = vst [vmem:[#allocation2 + $0x58] sm:$0xff] 0.0
    %v70 = vld [vmem:[%s0] sm:$0xff]
    %v71 = vld [vmem:[%s0 + $0x8] sm:$0xff]
    %v72 = vld [vmem:[%s0 + $0x18] sm:$0xff]
    %v73 = vld [vmem:[%s0 + $0x20] sm:$0xff]
    %vm74 = vcmask 523264
    %75 = vst.msk [vmem:[#allocation2] sm:$0xff] %vm74, %v70
    %76 = vst.msk [vmem:[#allocation2 + $0x18] sm:$0xff] %vm74, %v71
    %77 = vst.msk [vmem:[#allocation2 + $0x30] sm:$0xff] %vm74, %v72
    %78 = vst.msk [vmem:[#allocation2 + $0x48] sm:$0xff] %vm74, %v73
    %v79 = vld [vmem:[%s0 + $0x1] sm:$0xff]
    %v80 = vld [vmem:[%s0 + $0x9] sm:$0xff]
    %v81 = vld [vmem:[%s0 + $0x19] sm:$0xff]
    %v82 = vld [vmem:[%s0 + $0x21] sm:$0xff]
    %83 = vst.msk [vmem:[#allocation2 + $0x8] sm:$0xff] %vm74, %v79
    %84 = vst.msk [vmem:[#allocation2 + $0x20] sm:$0xff] %vm74, %v80
    %85 = vst.msk [vmem:[#allocation2 + $0x38] sm:$0xff] %vm74, %v81
    %86 = vst.msk [vmem:[#allocation2 + $0x50] sm:$0xff] %vm74, %v82
    %v87 = vld [vmem:[%s0 + $0x2] sm:$0xff]
    %v88 = vld [vmem:[%s0 + $0xa] sm:$0xff]
    %v89 = vld [vmem:[%s0 + $0x1a] sm:$0xff]
    %v90 = vld [vmem:[%s0 + $0x22] sm:$0xff]
    %91 = vst.msk [vmem:[#allocation2 + $0x10] sm:$0xff] %vm74, %v87
    %92 = vst.msk [vmem:[#allocation2 + $0x28] sm:$0xff] %vm74, %v88
    %93 = vst.msk [vmem:[#allocation2 + $0x40] sm:$0xff] %vm74, %v89
    %94 = vst.msk [vmem:[#allocation2 + $0x58] sm:$0xff] %vm74, %v90
    %v95 = vld [vmem:[#allocation2] sm:$0xff]
    %v96 = vld [vmem:[#allocation2 + $0x8] sm:$0xff]
    %v97 = vld [vmem:[#allocation2 + $0x10] sm:$0xff]
    %v98 = vld [vmem:[#allocation2 + $0x18] sm:$0xff]
    %v99 = vld [vmem:[#allocation2 + $0x20] sm:$0xff]
    %v100 = vld [vmem:[#allocation2 + $0x28] sm:$0xff]
    %v101 = vld [vmem:[#allocation2 + $0x30] sm:$0xff]
    %v102 = vld [vmem:[#allocation2 + $0x38] sm:$0xff]
    %v103 = vld [vmem:[#allocation2 + $0x40] sm:$0xff]
    %v104 = vld [vmem:[#allocation2 + $0x48] sm:$0xff]
    %v105 = vld [vmem:[#allocation2 + $0x50] sm:$0xff]
    %v106 = vld [vmem:[#allocation2 + $0x58] sm:$0xff]
    %v107 = vld [vmem:[%s1] sm:$0xff]
    %v108 = vld [vmem:[%s1 + $0x8] sm:$0xff]
    %v109 = vld [vmem:[%s1 + $0x10] sm:$0xff]
    %v110 = vld [vmem:[%s1 + $0x18] sm:$0xff]
    %v111 = vld [vmem:[%s1 + $0x20] sm:$0xff]
    %v112 = vld [vmem:[%s1 + $0x28] sm:$0xff]
    %v113 = vld [vmem:[%s1 + $0x30] sm:$0xff]
    %v114 = vld [vmem:[%s1 + $0x38] sm:$0xff]
    %v115 = vld [vmem:[%s1 + $0x40] sm:$0xff]
    %v116 = vld [vmem:[%s1 + $0x48] sm:$0xff]
    %v117 = vld [vmem:[%s1 + $0x50] sm:$0xff]
    %v118 = vld [vmem:[%s1 + $0x58] sm:$0xff]
    %v119 = vld [vmem:[%s1 + $0x60] sm:$0xff]
    %v120 = vld [vmem:[%s1 + $0x68] sm:$0xff]
    %v121 = vld [vmem:[%s1 + $0x70] sm:$0xff]
    %v122 = vld [vmem:[%s1 + $0x78] sm:$0xff]
    %v123 = vld [vmem:[%s1 + $0x80] sm:$0xff]
    %v124 = vld [vmem:[%s1 + $0x88] sm:$0xff]
    %v125 = vld [vmem:[%s1 + $0x90] sm:$0xff]
    %v126 = vld [vmem:[%s1 + $0x98] sm:$0xff]
    %v127 = vld [vmem:[%s1 + $0xa0] sm:$0xff]
    %v128 = vld [vmem:[%s1 + $0xa8] sm:$0xff]
    %v129 = vld [vmem:[%s1 + $0xb0] sm:$0xff]
    %v130 = vld [vmem:[%s1 + $0xb8] sm:$0xff]
    %v131 = vld [vmem:[%s1 + $0xc0] sm:$0xff]
    %v132 = vld [vmem:[%s1 + $0xc8] sm:$0xff]
    %v133 = vld [vmem:[%s1 + $0xd0] sm:$0xff]
    %v134 = vld [vmem:[%s1 + $0xd8] sm:$0xff]
    %v135 = vld [vmem:[%s1 + $0xe0] sm:$0xff]
    %v136 = vld [vmem:[%s1 + $0xe8] sm:$0xff]
    %v137 = vld [vmem:[%s1 + $0xf0] sm:$0xff]
    %v138 = vld [vmem:[%s1 + $0xf8] sm:$0xff]
    %v139 = vld [vmem:[%s1 + $0x100] sm:$0xff]
    %v140 = vld [vmem:[%s1 + $0x108] sm:$0xff]
    %v141 = vld [vmem:[%s1 + $0x110] sm:$0xff]
    %v142 = vld [vmem:[%s1 + $0x118] sm:$0xff]
    %v143 = vld [vmem:[%s1 + $0x120] sm:$0xff]
    %v144 = vld [vmem:[%s1 + $0x128] sm:$0xff]
    %v145 = vld [vmem:[%s1 + $0x130] sm:$0xff]
    %v146 = vld [vmem:[%s1 + $0x138] sm:$0xff]
    %v147 = vld [vmem:[%s1 + $0x140] sm:$0xff]
    %v148 = vld [vmem:[%s1 + $0x148] sm:$0xff]
    %v149 = vld [vmem:[%s1 + $0x150] sm:$0xff]
    %v150 = vld [vmem:[%s1 + $0x158] sm:$0xff]
    %v151 = vld [vmem:[%s1 + $0x160] sm:$0xff]
    %v152 = vld [vmem:[%s1 + $0x168] sm:$0xff]
    %v153 = vld [vmem:[%s1 + $0x170] sm:$0xff]
    %v154 = vld [vmem:[%s1 + $0x178] sm:$0xff]
    %155 = vmatprep.subr.mxu0 0.0
    %156 = vmatpush1.msra.mxu0 %v122
    %157 = vmatprep.subr.mxu0 0.0
    %158 = vmatpush1.msra.mxu0 %v121
    %159 = vmatprep.subr.mxu0 0.0
    %160 = vmatpush1.msra.mxu0 %v120
    %161 = vmatprep.subr.mxu0 0.0
    %162 = vmatpush1.msra.mxu0 %v119
    %163 = vmatprep.subr.mxu0 0.0
    %164 = vmatpush1.msra.mxu0 %v118
    %165 = vmatprep.subr.mxu0 0.0
    %166 = vmatpush1.msra.mxu0 %v117
    %167 = vmatprep.subr.mxu0 0.0
    %168 = vmatpush1.msra.mxu0 %v116
    %169 = vmatprep.subr.mxu0 0.0
    %170 = vmatpush1.msra.mxu0 %v115
    %171 = vmatprep.subr.mxu0 0.0
    %172 = vmatpush1.msra.mxu0 %v114
    %173 = vmatprep.subr.mxu0 0.0
    %174 = vmatpush1.msra.mxu0 %v113
    %175 = vmatprep.subr.mxu0 0.0
    %176 = vmatpush1.msra.mxu0 %v112
    %177 = vmatprep.subr.mxu0 0.0
    %178 = vmatpush1.msra.mxu0 %v111
    %179 = vmatprep.subr.mxu0 0.0
    %180 = vmatpush1.msra.mxu0 %v110
    %181 = vmatprep.subr.mxu0 0.0
    %182 = vmatpush1.msra.mxu0 %v109
    %183 = vmatprep.subr.mxu0 0.0
    %184 = vmatpush1.msra.mxu0 %v108
    %185 = vmatprep.subr.mxu0 0.0
    %186 = vmatpush1.msra.mxu0 %v107
    %187 = vmatprep.subr.mxu0 0.0
    %188 = vmatpush2.msra.mxu0 %v138
    %189 = vmatprep.subr.mxu0 0.0
    %190 = vmatpush2.msra.mxu0 %v137
    %191 = vmatprep.subr.mxu0 0.0
    %192 = vmatpush2.msra.mxu0 %v136
    %193 = vmatprep.subr.mxu0 0.0
    %194 = vmatpush2.msra.mxu0 %v135
    %195 = vmatprep.subr.mxu0 0.0
    %196 = vmatpush2.msra.mxu0 %v134
    %197 = vmatprep.subr.mxu0 0.0
    %198 = vmatpush2.msra.mxu0 %v133
    %199 = vmatprep.subr.mxu0 0.0
    %200 = vmatpush2.msra.mxu0 %v132
    %201 = vmatprep.subr.mxu0 0.0
    %202 = vmatpush2.msra.mxu0 %v131
    %203 = vmatprep.subr.mxu0 0.0
    %204 = vmatpush2.msra.mxu0 %v130
    %205 = vmatprep.subr.mxu0 0.0
    %206 = vmatpush2.msra.mxu0 %v129
    %207 = vmatprep.subr.mxu0 0.0
    %208 = vmatpush2.msra.mxu0 %v128
    %209 = vmatprep.subr.mxu0 0.0
    %210 = vmatpush2.msra.mxu0 %v127
    %211 = vmatprep.subr.mxu0 0.0
    %212 = vmatpush2.msra.mxu0 %v126
    %213 = vmatprep.subr.mxu0 0.0
    %214 = vmatpush2.msra.mxu0 %v125
    %215 = vmatprep.subr.mxu0 0.0
    %216 = vmatpush2.msra.mxu0 %v124
    %217 = vmatprep.subr.mxu0 0.0
    %218 = vmatpush2.msra.mxu0 %v123
    %219 = vmatprep.mubr.f32.mxu0 %v96
    %220 = vmatmul.mubr.f32.gmra.mxu0 %v95
    %v221 = vpop.f32.mrf.mxu0
    %v222 = vadd.f32 0.0, %v221
    %v223 = vpop.f32.mrf.mxu0
    %224 = vmatprep.mubr.f32.mxu0 %v99
    %225 = vmatmul.mubr.f32.gmra.mxu0 %v98
    %v226 = vpop.f32.mrf.mxu0
    %v227 = vadd.f32 0.0, %v226
    %v228 = vpop.f32.mrf.mxu0
    %229 = vmatprep.mubr.f32.mxu0 %v102
    %230 = vmatmul.mubr.f32.gmra.mxu0 %v101
    %v231 = vpop.f32.mrf.mxu0
    %v232 = vadd.f32 0.0, %v231
    %v233 = vpop.f32.mrf.mxu0
    %234 = vmatprep.mubr.f32.mxu0 %v105
    %235 = vmatmul.mubr.f32.gmra.mxu0 %v104
    %v236 = vpop.f32.mrf.mxu0
    %v237 = vadd.f32 0.0, %v236
    %v238 = vpop.f32.mrf.mxu0
    %239 = vdwg.mxu0
    %240 = vmatprep.subr.mxu0 0.0
    %241 = vmatpush1.msra.mxu0 %v154
    %242 = vmatprep.subr.mxu0 0.0
    %243 = vmatpush1.msra.mxu0 %v153
    %244 = vmatprep.subr.mxu0 0.0
    %245 = vmatpush1.msra.mxu0 %v152
    %246 = vmatprep.subr.mxu0 0.0
    %247 = vmatpush1.msra.mxu0 %v151
    %248 = vmatprep.subr.mxu0 0.0
    %249 = vmatpush1.msra.mxu0 %v150
    %250 = vmatprep.subr.mxu0 0.0
    %251 = vmatpush1.msra.mxu0 %v149
    %252 = vmatprep.subr.mxu0 0.0
    %253 = vmatpush1.msra.mxu0 %v148
    %254 = vmatprep.subr.mxu0 0.0
    %255 = vmatpush1.msra.mxu0 %v147
    %256 = vmatprep.subr.mxu0 0.0
    %257 = vmatpush1.msra.mxu0 %v146
    %258 = vmatprep.subr.mxu0 0.0
    %259 = vmatpush1.msra.mxu0 %v145
    %260 = vmatprep.subr.mxu0 0.0
    %261 = vmatpush1.msra.mxu0 %v144
    %262 = vmatprep.subr.mxu0 0.0
    %263 = vmatpush1.msra.mxu0 %v143
    %264 = vmatprep.subr.mxu0 0.0
    %265 = vmatpush1.msra.mxu0 %v142
    %266 = vmatprep.subr.mxu0 0.0
    %267 = vmatpush1.msra.mxu0 %v141
    %268 = vmatprep.subr.mxu0 0.0
    %269 = vmatpush1.msra.mxu0 %v140
    %270 = vmatprep.subr.mxu0 0.0
    %271 = vmatpush1.msra.mxu0 %v139
    %272 = vmatprep.subr.mxu0 0.0
    %273 = vmatpush2.msra.mxu0 0.0
    %274 = vmatprep.subr.mxu0 0.0
    %275 = vmatpush2.msra.mxu0 0.0
    %276 = vmatprep.subr.mxu0 0.0
    %277 = vmatpush2.msra.mxu0 0.0
    %278 = vmatprep.subr.mxu0 0.0
    %279 = vmatpush2.msra.mxu0 0.0
    %280 = vmatprep.subr.mxu0 0.0
    %281 = vmatpush2.msra.mxu0 0.0
    %282 = vmatprep.subr.mxu0 0.0
    %283 = vmatpush2.msra.mxu0 0.0
    %284 = vmatprep.subr.mxu0 0.0
    %285 = vmatpush2.msra.mxu0 0.0
    %286 = vmatprep.subr.mxu0 0.0
    %287 = vmatpush2.msra.mxu0 0.0
    %288 = vmatprep.subr.mxu0 0.0
    %289 = vmatpush2.msra.mxu0 0.0
    %290 = vmatprep.subr.mxu0 0.0
    %291 = vmatpush2.msra.mxu0 0.0
    %292 = vmatprep.subr.mxu0 0.0
    %293 = vmatpush2.msra.mxu0 0.0
    %294 = vmatprep.subr.mxu0 0.0
    %295 = vmatpush2.msra.mxu0 0.0
    %296 = vmatprep.subr.mxu0 0.0
    %297 = vmatpush2.msra.mxu0 0.0
    %298 = vmatprep.subr.mxu0 0.0
    %299 = vmatpush2.msra.mxu0 0.0
    %300 = vmatprep.subr.mxu0 0.0
    %301 = vmatpush2.msra.mxu0 0.0
    %302 = vmatprep.subr.mxu0 0.0
    %303 = vmatpush2.msra.mxu0 0.0
    %304 = vmatprep.mubr.f32.mxu0 0.0
    %305 = vmatmul.mubr.f32.gmra.mxu0 %v97
    %v306 = vpop.f32.mrf.mxu0
    %v307 = vadd.f32 %v222, %v306
    %v308 = vpop.f32.mrf.mxu0
    %309 = vmatprep.mubr.f32.mxu0 0.0
    %310 = vmatmul.mubr.f32.gmra.mxu0 %v100
    %v311 = vpop.f32.mrf.mxu0
    %v312 = vadd.f32 %v227, %v311
    %v313 = vpop.f32.mrf.mxu0
    %314 = vmatprep.mubr.f32.mxu0 0.0
    %315 = vmatmul.mubr.f32.gmra.mxu0 %v103
    %v316 = vpop.f32.mrf.mxu0
    %v317 = vadd.f32 %v232, %v316
    %v318 = vpop.f32.mrf.mxu0
    %319 = vmatprep.mubr.f32.mxu0 0.0
    %320 = vmatmul.mubr.f32.gmra.mxu0 %v106
    %v321 = vpop.f32.mrf.mxu0
    %v322 = vadd.f32 %v237, %v321
    %v323 = vpop.f32.mrf.mxu0
    %324 = vdwg.mxu0
    %v325 = vmax.f32 %v307, 0.0
    %v326 = vmax.f32 %v312, 0.0
    %v327 = vmax.f32 %v317, 0.0
    %v328 = vmax.f32 %v322, 0.0
    %329 = vst [vmem:[#allocation3] sm:$0xff] 0.0
    %330 = vst [vmem:[#allocation3 + $0x8] sm:$0xff] 0.0
    %331 = vst [vmem:[#allocation3 + $0x10] sm:$0x3] 0.0
    %332 = vst [vmem:[#allocation3 + $0x18] sm:$0xff] 0.0
    %333 = vst [vmem:[#allocation3 + $0x20] sm:$0xff] 0.0
    %334 = vst [vmem:[#allocation3 + $0x28] sm:$0x3] 0.0
    %335 = vst [vmem:[#allocation3 + $0x1] sm:$0xff] %v325
    %336 = vst [vmem:[#allocation3 + $0x9] sm:$0xff] %v326
    %s337 = scalar_lea.vmem [#allocation3], 24
    %338 = vst [vmem:[%s337 + $0x1] sm:$0xff] %v327
    %339 = vst [vmem:[%s337 + $0x9] sm:$0xff] %v328
    %v340 = vld [vmem:[#allocation3] sm:$0xff]
    %v341 = vld [vmem:[#allocation3 + $0x8] sm:$0xff]
    %v342 = vld [vmem:[#allocation3 + $0x18] sm:$0xff]
    %v343 = vld [vmem:[#allocation3 + $0x20] sm:$0xff]
    %344 = vst [vmem:[#allocation4] sm:$0xff] %v340
    %345 = vst [vmem:[#allocation4 + $0x18] sm:$0xff] %v341
    %346 = vst [vmem:[#allocation4 + $0x30] sm:$0xff] %v342
    %347 = vst [vmem:[#allocation4 + $0x48] sm:$0xff] %v343
    %v348 = vld [vmem:[#allocation3 + $0x1] sm:$0xff]
    %v349 = vld [vmem:[#allocation3 + $0x9] sm:$0xff]
    %v350 = vld [vmem:[#allocation3 + $0x19] sm:$0xff]
    %v351 = vld [vmem:[#allocation3 + $0x21] sm:$0xff]
    %352 = vst [vmem:[#allocation4 + $0x8] sm:$0xff] %v348
    %353 = vst [vmem:[#allocation4 + $0x20] sm:$0xff] %v349
    %354 = vst [vmem:[#allocation4 + $0x38] sm:$0xff] %v350
    %355 = vst [vmem:[#allocation4 + $0x50] sm:$0xff] %v351
    %v356 = vld [vmem:[#allocation3 + $0x2] sm:$0xff]
    %v357 = vld [vmem:[#allocation3 + $0xa] sm:$0xff]
    %v358 = vld [vmem:[#allocation3 + $0x1a] sm:$0xff]
    %v359 = vld [vmem:[#allocation3 + $0x22] sm:$0xff]
    %360 = vst [vmem:[#allocation4 + $0x10] sm:$0xff] %v356
    %361 = vst [vmem:[#allocation4 + $0x28] sm:$0xff] %v357
    %362 = vst [vmem:[#allocation4 + $0x40] sm:$0xff] %v358
    %363 = vst [vmem:[#allocation4 + $0x58] sm:$0xff] %v359
    %v364 = vld [vmem:[#allocation4] sm:$0xff]
    %v365 = vld [vmem:[#allocation4 + $0x8] sm:$0xff]
    %v366 = vld [vmem:[#allocation4 + $0x10] sm:$0xff]
    %v367 = vld [vmem:[#allocation4 + $0x18] sm:$0xff]
    %v368 = vld [vmem:[#allocation4 + $0x20] sm:$0xff]
    %v369 = vld [vmem:[#allocation4 + $0x28] sm:$0xff]
    %v370 = vld [vmem:[#allocation4 + $0x30] sm:$0xff]
    %v371 = vld [vmem:[#allocation4 + $0x38] sm:$0xff]
    %v372 = vld [vmem:[#allocation4 + $0x40] sm:$0xff]
    %v373 = vld [vmem:[#allocation4 + $0x48] sm:$0xff]
    %v374 = vld [vmem:[#allocation4 + $0x50] sm:$0xff]
    %v375 = vld [vmem:[#allocation4 + $0x58] sm:$0xff]
    %v376 = vld [vmem:[#allocation5] sm:$0xff]
    %v377 = vld [vmem:[#allocation5 + $0x8] sm:$0xff]
    %v378 = vld [vmem:[#allocation5 + $0x10] sm:$0xff]
    %v379 = vld [vmem:[#allocation5 + $0x18] sm:$0xff]
    %v380 = vld [vmem:[#allocation5 + $0x20] sm:$0xff]
    %v381 = vld [vmem:[#allocation5 + $0x28] sm:$0xff]
    %v382 = vld [vmem:[#allocation5 + $0x30] sm:$0xff]
    %v383 = vld [vmem:[#allocation5 + $0x38] sm:$0xff]
    %v384 = vld [vmem:[#allocation5 + $0x40] sm:$0xff]
    %v385 = vld [vmem:[#allocation5 + $0x48] sm:$0xff]
    %v386 = vld [vmem:[#allocation5 + $0x50] sm:$0xff]
    %v387 = vld [vmem:[#allocation5 + $0x58] sm:$0xff]
    %v388 = vld [vmem:[#allocation5 + $0x60] sm:$0xff]
    %v389 = vld [vmem:[#allocation5 + $0x68] sm:$0xff]
    %v390 = vld [vmem:[#allocation5 + $0x70] sm:$0xff]
    %v391 = vld [vmem:[#allocation5 + $0x78] sm:$0xff]
    %v392 = vld [vmem:[#allocation5 + $0x80] sm:$0xff]
    %v393 = vld [vmem:[#allocation5 + $0x88] sm:$0xff]
    %v394 = vld [vmem:[#allocation5 + $0x90] sm:$0xff]
    %v395 = vld [vmem:[#allocation5 + $0x98] sm:$0xff]
    %v396 = vld [vmem:[#allocation5 + $0xa0] sm:$0xff]
    %v397 = vld [vmem:[#allocation5 + $0xa8] sm:$0xff]
    %v398 = vld [vmem:[#allocation5 + $0xb0] sm:$0xff]
    %v399 = vld [vmem:[#allocation5 + $0xb8] sm:$0xff]
    %v400 = vld [vmem:[#allocation5 + $0xc0] sm:$0xff]
    %v401 = vld [vmem:[#allocation5 + $0xc8] sm:$0xff]
    %v402 = vld [vmem:[#allocation5 + $0xd0] sm:$0xff]
    %v403 = vld [vmem:[#allocation5 + $0xd8] sm:$0xff]
    %v404 = vld [vmem:[#allocation5 + $0xe0] sm:$0xff]
    %v405 = vld [vmem:[#allocation5 + $0xe8] sm:$0xff]
    %v406 = vld [vmem:[#allocation5 + $0xf0] sm:$0xff]
    %v407 = vld [vmem:[#allocation5 + $0xf8] sm:$0xff]
    %v408 = vld [vmem:[#allocation5 + $0x100] sm:$0xff]
    %v409 = vld [vmem:[#allocation5 + $0x108] sm:$0xff]
    %v410 = vld [vmem:[#allocation5 + $0x110] sm:$0xff]
    %v411 = vld [vmem:[#allocation5 + $0x118] sm:$0xff]
    %v412 = vld [vmem:[#allocation5 + $0x120] sm:$0xff]
    %v413 = vld [vmem:[#allocation5 + $0x128] sm:$0xff]
    %v414 = vld [vmem:[#allocation5 + $0x130] sm:$0xff]
    %v415 = vld [vmem:[#allocation5 + $0x138] sm:$0xff]
    %v416 = vld [vmem:[#allocation5 + $0x140] sm:$0xff]
    %v417 = vld [vmem:[#allocation5 + $0x148] sm:$0xff]
    %v418 = vld [vmem:[#allocation5 + $0x150] sm:$0xff]
    %v419 = vld [vmem:[#allocation5 + $0x158] sm:$0xff]
    %v420 = vld [vmem:[#allocation5 + $0x160] sm:$0xff]
    %v421 = vld [vmem:[#allocation5 + $0x168] sm:$0xff]
    %v422 = vld [vmem:[#allocation5 + $0x170] sm:$0xff]
    %v423 = vld [vmem:[#allocation5 + $0x178] sm:$0xff]
    %424 = vmatprep.subr.mxu0 0.0
    %425 = vmatpush1.msra.mxu0 %v391
    %426 = vmatprep.subr.mxu0 0.0
    %427 = vmatpush1.msra.mxu0 %v390
    %428 = vmatprep.subr.mxu0 0.0
    %429 = vmatpush1.msra.mxu0 %v389
    %430 = vmatprep.subr.mxu0 0.0
    %431 = vmatpush1.msra.mxu0 %v388
    %432 = vmatprep.subr.mxu0 0.0
    %433 = vmatpush1.msra.mxu0 %v387
    %434 = vmatprep.subr.mxu0 0.0
    %435 = vmatpush1.msra.mxu0 %v386
    %436 = vmatprep.subr.mxu0 0.0
    %437 = vmatpush1.msra.mxu0 %v385
    %438 = vmatprep.subr.mxu0 0.0
    %439 = vmatpush1.msra.mxu0 %v384
    %440 = vmatprep.subr.mxu0 0.0
    %441 = vmatpush1.msra.mxu0 %v383
    %442 = vmatprep.subr.mxu0 0.0
    %443 = vmatpush1.msra.mxu0 %v382
    %444 = vmatprep.subr.mxu0 0.0
    %445 = vmatpush1.msra.mxu0 %v381
    %446 = vmatprep.subr.mxu0 0.0
    %447 = vmatpush1.msra.mxu0 %v380
    %448 = vmatprep.subr.mxu0 0.0
    %449 = vmatpush1.msra.mxu0 %v379
    %450 = vmatprep.subr.mxu0 0.0
    %451 = vmatpush1.msra.mxu0 %v378
    %452 = vmatprep.subr.mxu0 0.0
    %453 = vmatpush1.msra.mxu0 %v377
    %454 = vmatprep.subr.mxu0 0.0
    %455 = vmatpush1.msra.mxu0 %v376
    %456 = vmatprep.subr.mxu0 0.0
    %457 = vmatpush2.msra.mxu0 %v407
    %458 = vmatprep.subr.mxu0 0.0
    %459 = vmatpush2.msra.mxu0 %v406
    %460 = vmatprep.subr.mxu0 0.0
    %461 = vmatpush2.msra.mxu0 %v405
    %462 = vmatprep.subr.mxu0 0.0
    %463 = vmatpush2.msra.mxu0 %v404
    %464 = vmatprep.subr.mxu0 0.0
    %465 = vmatpush2.msra.mxu0 %v403
    %466 = vmatprep.subr.mxu0 0.0
    %467 = vmatpush2.msra.mxu0 %v402
    %468 = vmatprep.subr.mxu0 0.0
    %469 = vmatpush2.msra.mxu0 %v401
    %470 = vmatprep.subr.mxu0 0.0
    %471 = vmatpush2.msra.mxu0 %v400
    %472 = vmatprep.subr.mxu0 0.0
    %473 = vmatpush2.msra.mxu0 %v399
    %474 = vmatprep.subr.mxu0 0.0
    %475 = vmatpush2.msra.mxu0 %v398
    %476 = vmatprep.subr.mxu0 0.0
    %477 = vmatpush2.msra.mxu0 %v397
    %478 = vmatprep.subr.mxu0 0.0
    %479 = vmatpush2.msra.mxu0 %v396
    %480 = vmatprep.subr.mxu0 0.0
    %481 = vmatpush2.msra.mxu0 %v395
    %482 = vmatprep.subr.mxu0 0.0
    %483 = vmatpush2.msra.mxu0 %v394
    %484 = vmatprep.subr.mxu0 0.0
    %485 = vmatpush2.msra.mxu0 %v393
    %486 = vmatprep.subr.mxu0 0.0
    %487 = vmatpush2.msra.mxu0 %v392
    %488 = vmatprep.mubr.f32.mxu0 %v365
    %489 = vmatmul.mubr.f32.gmra.mxu0 %v364
    %v490 = vpop.f32.mrf.mxu0
    %v491 = vadd.f32 0.0, %v490
    %v492 = vpop.f32.mrf.mxu0
    %493 = vmatprep.mubr.f32.mxu0 %v368
    %494 = vmatmul.mubr.f32.gmra.mxu0 %v367
    %v495 = vpop.f32.mrf.mxu0
    %v496 = vadd.f32 0.0, %v495
    %v497 = vpop.f32.mrf.mxu0
    %498 = vmatprep.mubr.f32.mxu0 %v371
    %499 = vmatmul.mubr.f32.gmra.mxu0 %v370
    %v500 = vpop.f32.mrf.mxu0
    %v501 = vadd.f32 0.0, %v500
    %v502 = vpop.f32.mrf.mxu0
    %503 = vmatprep.mubr.f32.mxu0 %v374
    %504 = vmatmul.mubr.f32.gmra.mxu0 %v373
    %v505 = vpop.f32.mrf.mxu0
    %v506 = vadd.f32 0.0, %v505
    %v507 = vpop.f32.mrf.mxu0
    %508 = vdwg.mxu0
    %509 = vmatprep.subr.mxu0 0.0
    %510 = vmatpush1.msra.mxu0 %v423
    %511 = vmatprep.subr.mxu0 0.0
    %512 = vmatpush1.msra.mxu0 %v422
    %513 = vmatprep.subr.mxu0 0.0
    %514 = vmatpush1.msra.mxu0 %v421
    %515 = vmatprep.subr.mxu0 0.0
    %516 = vmatpush1.msra.mxu0 %v420
    %517 = vmatprep.subr.mxu0 0.0
    %518 = vmatpush1.msra.mxu0 %v419
    %519 = vmatprep.subr.mxu0 0.0
    %520 = vmatpush1.msra.mxu0 %v418
    %521 = vmatprep.subr.mxu0 0.0
    %522 = vmatpush1.msra.mxu0 %v417
    %523 = vmatprep.subr.mxu0 0.0
    %524 = vmatpush1.msra.mxu0 %v416
    %525 = vmatprep.subr.mxu0 0.0
    %526 = vmatpush1.msra.mxu0 %v415
    %527 = vmatprep.subr.mxu0 0.0
    %528 = vmatpush1.msra.mxu0 %v414
    %529 = vmatprep.subr.mxu0 0.0
    %530 = vmatpush1.msra.mxu0 %v413
    %531 = vmatprep.subr.mxu0 0.0
    %532 = vmatpush1.msra.mxu0 %v412
    %533 = vmatprep.subr.mxu0 0.0
    %534 = vmatpush1.msra.mxu0 %v411
    %535 = vmatprep.subr.mxu0 0.0
    %536 = vmatpush1.msra.mxu0 %v410
    %537 = vmatprep.subr.mxu0 0.0
    %538 = vmatpush1.msra.mxu0 %v409
    %539 = vmatprep.subr.mxu0 0.0
    %540 = vmatpush1.msra.mxu0 %v408
    %541 = vmatprep.subr.mxu0 0.0
    %542 = vmatpush2.msra.mxu0 0.0
    %543 = vmatprep.subr.mxu0 0.0
    %544 = vmatpush2.msra.mxu0 0.0
    %545 = vmatprep.subr.mxu0 0.0
    %546 = vmatpush2.msra.mxu0 0.0
    %547 = vmatprep.subr.mxu0 0.0
    %548 = vmatpush2.msra.mxu0 0.0
    %549 = vmatprep.subr.mxu0 0.0
    %550 = vmatpush2.msra.mxu0 0.0
    %551 = vmatprep.subr.mxu0 0.0
    %552 = vmatpush2.msra.mxu0 0.0
    %553 = vmatprep.subr.mxu0 0.0
    %554 = vmatpush2.msra.mxu0 0.0
    %555 = vmatprep.subr.mxu0 0.0
    %556 = vmatpush2.msra.mxu0 0.0
    %557 = vmatprep.subr.mxu0 0.0
    %558 = vmatpush2.msra.mxu0 0.0
    %559 = vmatprep.subr.mxu0 0.0
    %560 = vmatpush2.msra.mxu0 0.0
    %561 = vmatprep.subr.mxu0 0.0
    %562 = vmatpush2.msra.mxu0 0.0
    %563 = vmatprep.subr.mxu0 0.0
    %564 = vmatpush2.msra.mxu0 0.0
    %565 = vmatprep.subr.mxu0 0.0
    %566 = vmatpush2.msra.mxu0 0.0
    %567 = vmatprep.subr.mxu0 0.0
    %568 = vmatpush2.msra.mxu0 0.0
    %569 = vmatprep.subr.mxu0 0.0
    %570 = vmatpush2.msra.mxu0 0.0
    %571 = vmatprep.subr.mxu0 0.0
    %572 = vmatpush2.msra.mxu0 0.0
    %573 = vmatprep.mubr.f32.mxu0 0.0
    %574 = vmatmul.mubr.f32.gmra.mxu0 %v366
    %v575 = vpop.f32.mrf.mxu0
    %v576 = vadd.f32 %v491, %v575
    %v577 = vpop.f32.mrf.mxu0
    %578 = vmatprep.mubr.f32.mxu0 0.0
    %579 = vmatmul.mubr.f32.gmra.mxu0 %v369
    %v580 = vpop.f32.mrf.mxu0
    %v581 = vadd.f32 %v496, %v580
    %v582 = vpop.f32.mrf.mxu0
    %583 = vmatprep.mubr.f32.mxu0 0.0
    %584 = vmatmul.mubr.f32.gmra.mxu0 %v372
    %v585 = vpop.f32.mrf.mxu0
    %v586 = vadd.f32 %v501, %v585
    %v587 = vpop.f32.mrf.mxu0
    %588 = vmatprep.mubr.f32.mxu0 0.0
    %589 = vmatmul.mubr.f32.gmra.mxu0 %v375
    %v590 = vpop.f32.mrf.mxu0
    %v591 = vadd.f32 %v506, %v590
    %v592 = vpop.f32.mrf.mxu0
    %593 = vdwg.mxu0
    %v594 = vmax.f32 %v576, 0.0
    %v595 = vmax.f32 %v581, 0.0
    %v596 = vmax.f32 %v586, 0.0
    %v597 = vmax.f32 %v591, 0.0
    %598 = vst [vmem:[#allocation10] sm:$0xff] %v594
    %599 = vst [vmem:[#allocation10 + $0x8] sm:$0xff] %v595
    %600 = vst [vmem:[#allocation10 + $0x10] sm:$0xff] %v596
    %601 = vst [vmem:[#allocation10 + $0x18] sm:$0xff] %v597
    %v602 = vld [vmem:[%s3] sm:$0xff]
    %v603 = vld [vmem:[%s3 + $0x8] sm:$0xff]
    %vm604 = vcmask 261120
    %v606 = vsel %vm604, %v602, 0
    %v609 = vsel %vm604, %v603, 0
    %611 = vmatprep.subr.mxu0 0.0
    %612 = vmatpush1.msra.mxu0 0.0
    %613 = vmatprep.subr.mxu0 0.0
    %614 = vmatpush1.msra.mxu0 0.0
    %615 = vmatprep.subr.mxu0 0.0
    %616 = vmatpush1.msra.mxu0 0.0
    %617 = vmatprep.subr.mxu0 0.0
    %618 = vmatpush1.msra.mxu0 0.0
    %619 = vmatprep.subr.mxu0 0.0
    %620 = vmatpush1.msra.mxu0 0.0
    %621 = vmatprep.subr.mxu0 0.0
    %622 = vmatpush1.msra.mxu0 0.0
    %623 = vmatprep.subr.mxu0 0.0
    %624 = vmatpush1.msra.mxu0 0.0
    %625 = vmatprep.subr.mxu0 0.0
    %626 = vmatpush1.msra.mxu0 0.0
    %627 = vmatprep.subr.mxu0 0.0
    %628 = vmatpush1.msra.mxu0 0.0
    %629 = vmatprep.subr.mxu0 0.0
    %630 = vmatpush1.msra.mxu0 0.0
    %631 = vmatprep.subr.mxu0 0.0
    %632 = vmatpush1.msra.mxu0 0.0
    %633 = vmatprep.subr.mxu0 0.0
    %634 = vmatpush1.msra.mxu0 0.0
    %635 = vmatprep.subr.mxu0 0.0
    %636 = vmatpush1.msra.mxu0 %v597
    %637 = vmatprep.subr.mxu0 0.0
    %638 = vmatpush1.msra.mxu0 %v596
    %639 = vmatprep.subr.mxu0 0.0
    %640 = vmatpush1.msra.mxu0 %v595
    %641 = vmatprep.subr.mxu0 0.0
    %642 = vmatpush1.msra.mxu0 %v594
    %643 = vmatprep.subr.mxu0 0.0
    %644 = vmatpush2.msra.mxu0 0.0
    %645 = vmatprep.subr.mxu0 0.0
    %646 = vmatpush2.msra.mxu0 0.0
    %647 = vmatprep.subr.mxu0 0.0
    %648 = vmatpush2.msra.mxu0 0.0
    %649 = vmatprep.subr.mxu0 0.0
    %650 = vmatpush2.msra.mxu0 0.0
    %651 = vmatprep.subr.mxu0 0.0
    %652 = vmatpush2.msra.mxu0 0.0
    %653 = vmatprep.subr.mxu0 0.0
    %654 = vmatpush2.msra.mxu0 0.0
    %655 = vmatprep.subr.mxu0 0.0
    %656 = vmatpush2.msra.mxu0 0.0
    %657 = vmatprep.subr.mxu0 0.0
    %658 = vmatpush2.msra.mxu0 0.0
    %659 = vmatprep.subr.mxu0 0.0
    %660 = vmatpush2.msra.mxu0 0.0
    %661 = vmatprep.subr.mxu0 0.0
    %662 = vmatpush2.msra.mxu0 0.0
    %663 = vmatprep.subr.mxu0 0.0
    %664 = vmatpush2.msra.mxu0 0.0
    %665 = vmatprep.subr.mxu0 0.0
    %666 = vmatpush2.msra.mxu0 0.0
    %667 = vmatprep.subr.mxu0 0.0
    %668 = vmatpush2.msra.mxu0 0.0
    %669 = vmatprep.subr.mxu0 0.0
    %670 = vmatpush2.msra.mxu0 0.0
    %671 = vmatprep.subr.mxu0 0.0
    %672 = vmatpush2.msra.mxu0 0.0
    %673 = vmatprep.subr.mxu0 0.0
    %674 = vmatpush2.msra.mxu0 0.0
    %675 = vmatprep.mubr.f32.mxu0 0.0
    %676 = vmatmul.mubr.f32.gmra.mxu0 %v606
    %v677 = vpop.f32.mrf.mxu0
    %v678 = vadd.f32 0.0, %v677
    %v679 = vpop.f32.mrf.mxu0
    %680 = vmatprep.mubr.f32.mxu0 0.0
    %681 = vmatmul.mubr.f32.gmra.mxu0 %v609
    %v682 = vpop.f32.mrf.mxu0
    %v683 = vadd.f32 0.0, %v682
    %v684 = vpop.f32.mrf.mxu0
    %685 = vdwg.mxu0
    %v686 = vld [vmem:[#allocation8] sm:$0xff]
    %v687 = vld [vmem:[#allocation8 + $0x8] sm:$0xff]
    %v689 = vsel %vm604, %v686, 0
    %v692 = vsel %vm604, %v687, 0
    %694 = vmatprep.subr.mxu0 0.0
    %695 = vmatpush1.msra.mxu0 0.0
    %696 = vmatprep.subr.mxu0 0.0
    %697 = vmatpush1.msra.mxu0 0.0
    %698 = vmatprep.subr.mxu0 0.0
    %699 = vmatpush1.msra.mxu0 0.0
    %700 = vmatprep.subr.mxu0 0.0
    %701 = vmatpush1.msra.mxu0 0.0
    %702 = vmatprep.subr.mxu0 0.0
    %703 = vmatpush1.msra.mxu0 0.0
    %704 = vmatprep.subr.mxu0 0.0
    %705 = vmatpush1.msra.mxu0 0.0
    %706 = vmatprep.subr.mxu0 0.0
    %707 = vmatpush1.msra.mxu0 0.0
    %708 = vmatprep.subr.mxu0 0.0
    %709 = vmatpush1.msra.mxu0 0.0
    %710 = vmatprep.subr.mxu0 0.0
    %711 = vmatpush1.msra.mxu0 0.0
    %712 = vmatprep.subr.mxu0 0.0
    %713 = vmatpush1.msra.mxu0 0.0
    %714 = vmatprep.subr.mxu0 0.0
    %715 = vmatpush1.msra.mxu0 0.0
    %716 = vmatprep.subr.mxu0 0.0
    %717 = vmatpush1.msra.mxu0 0.0
    %718 = vmatprep.subr.mxu0 0.0
    %719 = vmatpush1.msra.mxu0 %v597
    %720 = vmatprep.subr.mxu0 0.0
    %721 = vmatpush1.msra.mxu0 %v596
    %722 = vmatprep.subr.mxu0 0.0
    %723 = vmatpush1.msra.mxu0 %v595
    %724 = vmatprep.subr.mxu0 0.0
    %725 = vmatpush1.msra.mxu0 %v594
    %726 = vmatprep.subr.mxu0 0.0
    %727 = vmatpush2.msra.mxu0 0.0
    %728 = vmatprep.subr.mxu0 0.0
    %729 = vmatpush2.msra.mxu0 0.0
    %730 = vmatprep.subr.mxu0 0.0
    %731 = vmatpush2.msra.mxu0 0.0
    %732 = vmatprep.subr.mxu0 0.0
    %733 = vmatpush2.msra.mxu0 0.0
    %734 = vmatprep.subr.mxu0 0.0
    %735 = vmatpush2.msra.mxu0 0.0
    %736 = vmatprep.subr.mxu0 0.0
    %737 = vmatpush2.msra.mxu0 0.0
    %738 = vmatprep.subr.mxu0 0.0
    %739 = vmatpush2.msra.mxu0 0.0
    %740 = vmatprep.subr.mxu0 0.0
    %741 = vmatpush2.msra.mxu0 0.0
    %742 = vmatprep.subr.mxu0 0.0
    %743 = vmatpush2.msra.mxu0 0.0
    %744 = vmatprep.subr.mxu0 0.0
    %745 = vmatpush2.msra.mxu0 0.0
    %746 = vmatprep.subr.mxu0 0.0
    %747 = vmatpush2.msra.mxu0 0.0
    %748 = vmatprep.subr.mxu0 0.0
    %749 = vmatpush2.msra.mxu0 0.0
    %750 = vmatprep.subr.mxu0 0.0
    %751 = vmatpush2.msra.mxu0 0.0
    %752 = vmatprep.subr.mxu0 0.0
    %753 = vmatpush2.msra.mxu0 0.0
    %754 = vmatprep.subr.mxu0 0.0
    %755 = vmatpush2.msra.mxu0 0.0
    %756 = vmatprep.subr.mxu0 0.0
    %757 = vmatpush2.msra.mxu0 0.0
    %758 = vmatprep.mubr.f32.mxu0 0.0
    %759 = vmatmul.mubr.f32.gmra.mxu0 %v689
    %v760 = vpop.f32.mrf.mxu0
    %v761 = vadd.f32 0.0, %v760
    %v762 = vpop.f32.mrf.mxu0
    %763 = vmatprep.mubr.f32.mxu0 0.0
    %764 = vmatmul.mubr.f32.gmra.mxu0 %v692
    %v765 = vpop.f32.mrf.mxu0
    %v766 = vadd.f32 0.0, %v765
    %v767 = vpop.f32.mrf.mxu0
    %768 = vdwg.mxu0
    %v769 = vmax.f32 %v678, %v761
    %v770 = vmax.f32 %v683, %v766
    %v771 = vld [vmem:[%s5] sm:$0xff]
    %v772 = vld [vmem:[%s5 + $0x8] sm:$0xff]
    %v773 = vld [vmem:[%s5 + $0x10] sm:$0xff]
    %v774 = vld [vmem:[%s5 + $0x18] sm:$0xff]
    %v775 = vld [vmem:[%s5 + $0x20] sm:$0xff]
    %v776 = vld [vmem:[%s5 + $0x28] sm:$0xff]
    %v777 = vld [vmem:[%s5 + $0x30] sm:$0xff]
    %v778 = vld [vmem:[%s5 + $0x38] sm:$0xff]
    %v779 = vld [vmem:[%s5 + $0x40] sm:$0xff]
    %v780 = vld [vmem:[%s5 + $0x48] sm:$0xff]
    %v781 = vld [vmem:[%s5 + $0x50] sm:$0xff]
    %v782 = vld [vmem:[%s5 + $0x58] sm:$0xff]
    %v783 = vld [vmem:[%s5 + $0x60] sm:$0xff]
    %v784 = vld [vmem:[%s5 + $0x68] sm:$0xff]
    %v785 = vld [vmem:[%s5 + $0x70] sm:$0xff]
    %v786 = vld [vmem:[%s5 + $0x78] sm:$0xff]
    %787 = vmatprep.subr.mxu0 0.0
    %788 = vmatpush1.msra.mxu0 %v786
    %789 = vmatprep.subr.mxu0 0.0
    %790 = vmatpush1.msra.mxu0 %v785
    %791 = vmatprep.subr.mxu0 0.0
    %792 = vmatpush1.msra.mxu0 %v784
    %793 = vmatprep.subr.mxu0 0.0
    %794 = vmatpush1.msra.mxu0 %v783
    %795 = vmatprep.subr.mxu0 0.0
    %796 = vmatpush1.msra.mxu0 %v782
    %797 = vmatprep.subr.mxu0 0.0
    %798 = vmatpush1.msra.mxu0 %v781
    %799 = vmatprep.subr.mxu0 0.0
    %800 = vmatpush1.msra.mxu0 %v780
    %801 = vmatprep.subr.mxu0 0.0
    %802 = vmatpush1.msra.mxu0 %v779
    %803 = vmatprep.subr.mxu0 0.0
    %804 = vmatpush1.msra.mxu0 %v778
    %805 = vmatprep.subr.mxu0 0.0
    %806 = vmatpush1.msra.mxu0 %v777
    %807 = vmatprep.subr.mxu0 0.0
    %808 = vmatpush1.msra.mxu0 %v776
    %809 = vmatprep.subr.mxu0 0.0
    %810 = vmatpush1.msra.mxu0 %v775
    %811 = vmatprep.subr.mxu0 0.0
    %812 = vmatpush1.msra.mxu0 %v774
    %813 = vmatprep.subr.mxu0 0.0
    %814 = vmatpush1.msra.mxu0 %v773
    %815 = vmatprep.subr.mxu0 0.0
    %816 = vmatpush1.msra.mxu0 %v772
    %817 = vmatprep.subr.mxu0 0.0
    %818 = vmatpush1.msra.mxu0 %v771
    %819 = vmatprep.subr.mxu0 0.0
    %820 = vmatpush2.msra.mxu0 0.0
    %821 = vmatprep.subr.mxu0 0.0
    %822 = vmatpush2.msra.mxu0 0.0
    %823 = vmatprep.subr.mxu0 0.0
    %824 = vmatpush2.msra.mxu0 0.0
    %825 = vmatprep.subr.mxu0 0.0
    %826 = vmatpush2.msra.mxu0 0.0
    %827 = vmatprep.subr.mxu0 0.0
    %828 = vmatpush2.msra.mxu0 0.0
    %829 = vmatprep.subr.mxu0 0.0
    %830 = vmatpush2.msra.mxu0 0.0
    %831 = vmatprep.subr.mxu0 0.0
    %832 = vmatpush2.msra.mxu0 0.0
    %833 = vmatprep.subr.mxu0 0.0
    %834 = vmatpush2.msra.mxu0 0.0
    %835 = vmatprep.subr.mxu0 0.0
    %836 = vmatpush2.msra.mxu0 0.0
    %837 = vmatprep.subr.mxu0 0.0
    %838 = vmatpush2.msra.mxu0 0.0
    %839 = vmatprep.subr.mxu0 0.0
    %840 = vmatpush2.msra.mxu0 0.0
    %841 = vmatprep.subr.mxu0 0.0
    %842 = vmatpush2.msra.mxu0 0.0
    %843 = vmatprep.subr.mxu0 0.0
    %844 = vmatpush2.msra.mxu0 0.0
    %845 = vmatprep.subr.mxu0 0.0
    %846 = vmatpush2.msra.mxu0 0.0
    %847 = vmatprep.subr.mxu0 0.0
    %848 = vmatpush2.msra.mxu0 0.0
    %849 = vmatprep.subr.mxu0 0.0
    %850 = vmatpush2.msra.mxu0 0.0
    %851 = vmatprep.mubr.f32.mxu0 0.0
    %852 = vmatmul.mubr.f32.gmra.mxu0 %v769
    %v853 = vpop.f32.mrf.mxu0
    %v854 = vadd.f32 0.0, %v853
    %v855 = vpop.f32.mrf.mxu0
    %856 = vmatprep.mubr.f32.mxu0 0.0
    %857 = vmatmul.mubr.f32.gmra.mxu0 %v770
    %v858 = vpop.f32.mrf.mxu0
    %v859 = vadd.f32 0.0, %v858
    %v860 = vpop.f32.mrf.mxu0
    %861 = vdwg.mxu0
    %v862 = vld [vmem:[%s6] sm:$0xff]
    %v863 = vld [vmem:[%s6 + $0x8] sm:$0xff]
    %v864 = vld [vmem:[%s6 + $0x10] sm:$0xff]
    %v865 = vld [vmem:[%s6 + $0x18] sm:$0xff]
    %v866 = vld [vmem:[%s6 + $0x20] sm:$0xff]
    %v867 = vld [vmem:[%s6 + $0x28] sm:$0xff]
    %v868 = vld [vmem:[%s6 + $0x30] sm:$0xff]
    %v869 = vld [vmem:[%s6 + $0x38] sm:$0xff]
    %v870 = vld [vmem:[%s6 + $0x40] sm:$0xff]
    %v871 = vld [vmem:[%s6 + $0x48] sm:$0xff]
    %v872 = vld [vmem:[%s6 + $0x50] sm:$0xff]
    %v873 = vld [vmem:[%s6 + $0x58] sm:$0xff]
    %v874 = vld [vmem:[%s6 + $0x60] sm:$0xff]
    %v875 = vld [vmem:[%s6 + $0x68] sm:$0xff]
    %v876 = vld [vmem:[%s6 + $0x70] sm:$0xff]
    %v877 = vld [vmem:[%s6 + $0x78] sm:$0xff]
    %878 = vmatprep.subr.mxu0 0.0
    %879 = vmatpush1.msra.mxu0 %v877
    %880 = vmatprep.subr.mxu0 0.0
    %881 = vmatpush1.msra.mxu0 %v876
    %882 = vmatprep.subr.mxu0 0.0
    %883 = vmatpush1.msra.mxu0 %v875
    %884 = vmatprep.subr.mxu0 0.0
    %885 = vmatpush1.msra.mxu0 %v874
    %886 = vmatprep.subr.mxu0 0.0
    %887 = vmatpush1.msra.mxu0 %v873
    %888 = vmatprep.subr.mxu0 0.0
    %889 = vmatpush1.msra.mxu0 %v872
    %890 = vmatprep.subr.mxu0 0.0
    %891 = vmatpush1.msra.mxu0 %v871
    %892 = vmatprep.subr.mxu0 0.0
    %893 = vmatpush1.msra.mxu0 %v870
    %894 = vmatprep.subr.mxu0 0.0
    %895 = vmatpush1.msra.mxu0 %v869
    %896 = vmatprep.subr.mxu0 0.0
    %897 = vmatpush1.msra.mxu0 %v868
    %898 = vmatprep.subr.mxu0 0.0
    %899 = vmatpush1.msra.mxu0 %v867
    %900 = vmatprep.subr.mxu0 0.0
    %901 = vmatpush1.msra.mxu0 %v866
    %902 = vmatprep.subr.mxu0 0.0
    %903 = vmatpush1.msra.mxu0 %v865
    %904 = vmatprep.subr.mxu0 0.0
    %905 = vmatpush1.msra.mxu0 %v864
    %906 = vmatprep.subr.mxu0 0.0
    %907 = vmatpush1.msra.mxu0 %v863
    %908 = vmatprep.subr.mxu0 0.0
    %909 = vmatpush1.msra.mxu0 %v862
    %910 = vmatprep.subr.mxu0 0.0
    %911 = vmatpush2.msra.mxu0 0.0
    %912 = vmatprep.subr.mxu0 0.0
    %913 = vmatpush2.msra.mxu0 0.0
    %914 = vmatprep.subr.mxu0 0.0
    %915 = vmatpush2.msra.mxu0 0.0
    %916 = vmatprep.subr.mxu0 0.0
    %917 = vmatpush2.msra.mxu0 0.0
    %918 = vmatprep.subr.mxu0 0.0
    %919 = vmatpush2.msra.mxu0 0.0
    %920 = vmatprep.subr.mxu0 0.0
    %921 = vmatpush2.msra.mxu0 0.0
    %922 = vmatprep.subr.mxu0 0.0
    %923 = vmatpush2.msra.mxu0 0.0
    %924 = vmatprep.subr.mxu0 0.0
    %925 = vmatpush2.msra.mxu0 0.0
    %926 = vmatprep.subr.mxu0 0.0
    %927 = vmatpush2.msra.mxu0 0.0
    %928 = vmatprep.subr.mxu0 0.0
    %929 = vmatpush2.msra.mxu0 0.0
    %930 = vmatprep.subr.mxu0 0.0
    %931 = vmatpush2.msra.mxu0 0.0
    %932 = vmatprep.subr.mxu0 0.0
    %933 = vmatpush2.msra.mxu0 0.0
    %934 = vmatprep.subr.mxu0 0.0
    %935 = vmatpush2.msra.mxu0 0.0
    %936 = vmatprep.subr.mxu0 0.0
    %937 = vmatpush2.msra.mxu0 0.0
    %938 = vmatprep.subr.mxu0 0.0
    %939 = vmatpush2.msra.mxu0 0.0
    %940 = vmatprep.subr.mxu0 0.0
    %941 = vmatpush2.msra.mxu0 0.0
    %942 = vmatprep.mubr.f32.mxu0 0.0
    %943 = vmatmul.mubr.f32.gmra.mxu0 %v769
    %v944 = vpop.f32.mrf.mxu0
    %v945 = vadd.f32 0.0, %v944
    %v946 = vpop.f32.mrf.mxu0
    %947 = vmatprep.mubr.f32.mxu0 0.0
    %948 = vmatmul.mubr.f32.gmra.mxu0 %v770
    %v949 = vpop.f32.mrf.mxu0
    %v950 = vadd.f32 0.0, %v949
    %v951 = vpop.f32.mrf.mxu0
    %952 = vdwg.mxu0
    %v953 = vmax.f32 %v854, %v945
    %v954 = vmax.f32 %v859, %v950
    %955 = vst.msk [vmem:[#allocation11] sm:$0xff] %vm74, %v953
    %956 = vst.msk [vmem:[#allocation11 + $0x8] sm:$0xff] %vm74, %v954
    // Predicated region
    $region38: #{tpu_custom_call.1} parent=1 // pred_check
      _
    $region39: #{tpu_custom_call.1} parent=1 // pred_check_branch
      %958 = sbr.rel (0) target = $region41
    $region40: #{tpu_custom_call.1} parent=1 // pred_region
      %s960 = ssub.s32 512, 512
      %961 = vsyncadd [#allocation7], %s960
      %s962 = sshll.u32 [#allocation10], 4
      %s963 = int_to_ptr.vmem [resolvable:$true] %s962
      %968 = dma.vmem_to_hbm [thread:$0]  %s963, 512, %s7, [#allocation7], 128, 128, 8
    $region41: #{tpu_custom_call.1} parent=1 // pred_fallthru
      _
    // Predicated region
    $region42: #{tpu_custom_call.1} parent=1 // pred_check
      _
    $region43: #{tpu_custom_call.1} parent=1 // pred_check_branch
      %970 = sbr.rel (0) target = $region45
    $region44: #{tpu_custom_call.1} parent=1 // pred_region
      %s972 = ssub.s32 256, 256
      %973 = vsyncadd [#allocation12], %s972
      %s974 = sshll.u32 [#allocation11], 4
      %s975 = int_to_ptr.vmem [resolvable:$true] %s974
      %980 = dma.vmem_to_hbm [thread:$0]  %s975, 256, %s8, [#allocation12], 128, 128, 8
    $region45: #{tpu_custom_call.1} parent=1 // pred_fallthru
      _
    // Predicated region
    $region46: #{tpu_custom_call.1} parent=1 // pred_check
      _
    $region47: #{tpu_custom_call.1} parent=1 // pred_check_branch
      %982 = sbr.rel (0) target = $region49
    $region48: #{tpu_custom_call.1} parent=1 // pred_region
      %983 = dma.done [#allocation7], 512
    $region49: #{tpu_custom_call.1} parent=1 // pred_fallthru
      _
    // Predicated region
    $region50: #{tpu_custom_call.1} parent=1 // pred_check
      _
    $region51: #{tpu_custom_call.1} parent=1 // pred_check_branch
      %985 = sbr.rel (0) target = $region53
    $region52: #{tpu_custom_call.1} parent=1 // pred_region
      %986 = dma.done [#allocation12], 256
    $region53: #{tpu_custom_call.1} parent=1 // pred_fallthru
      _
    %987 = vsyncpa [#allocation6], 1
    %988 = vsyncpa [#allocation9], 1
    %989 = vsyncpa [#allocation7], 1
    %990 = vsyncpa [#allocation12], 1

</llo_original>
